<compile_context>
chip_gen: v7x
topology: tpu7x:2x2x1
jax: 0.10.0
libtpu: 0.0.40
codegen_flags: <defaults>
</compile_context>

<pallas_src>
import functools

import numpy as np
import jax
import jax.numpy as jnp
from jax import lax
from jax.experimental import pallas as pl
from jax.experimental.pallas import tpu as pltpu


def _freq_lookup_kernel(lbl_smem_ref, obj_lbl_ref, freq_ref, out_ref, *, TS, N, L, C):
    """Frequency-prior lookup for one (image, subject-tile) grid step.

    lbl_smem_ref : (M, N)        int32  SMEM  -- all labels (scalar-prefetched)
    obj_lbl_ref  : (1, N, 1)     int32  VMEM  -- this image's labels (object side)
    freq_ref     : (L, L, C)     f32    VMEM  -- resident prior (grid-invariant)
    out_ref      : (1, TS, N, C) f32    VMEM  -- out[0,i,j,:] = prior[lbl[s*TS+i], lbl[j], :]
    """
    m = pl.program_id(0)
    s = pl.program_id(1)

    # Object-side one-hot, built once per grid step ([N, L] is tiny).
    obj = obj_lbl_ref[0]                                              # [N, 1]
    onehot_obj = (obj == lax.broadcasted_iota(jnp.int32, (N, L), 1)
                  ).astype(jnp.float32)                               # [N, L]

    def body(i, carry):
        # Subject row-gather: dynamic leading-dim index into the resident prior.
        a = lbl_smem_ref[m, s * TS + i]
        a = jnp.clip(a, 0, L - 1)   # guard: an OOB label would be a wild VMEM read
        tab = freq_ref[a]                                             # [L, C]
        # Object column-gather as one small MXU matmul: [N, L] x [L, C] -> [N, C].
        out_ref[0, i] = jnp.dot(onehot_obj, tab,
                                preferred_element_type=jnp.float32)
        return carry

    lax.fori_loop(0, TS, body, 0, unroll=(TS <= 16))


def _pick_subj_tile(n):
    """Largest multiple-of-8 divisor of n, capped at 64 (falls back to n)."""
    for t in range(min(n, 64), 7, -1):
        if t % 8 == 0 and n % t == 0:
            return t
    return n


def relation_freq_logits(labels, freq_dist, *, subj_tile=None):
    """Batched (all images, one pallas_call) freq-prior lookup.

    labels    : [M, N]     int32 (values expected in [0, L))
    freq_dist : [L, L, C]  f32
    returns   : [M, N, N, C] f32, out[m,i,j,:] = freq_dist[labels[m,i], labels[m,j], :]
    """
    M, N = labels.shape
    L, L2, C = freq_dist.shape
    assert L == L2
    TS = subj_tile if subj_tile is not None else _pick_subj_tile(N)
    assert N % TS == 0, "subject tile must divide the proposal count"
    S = N // TS

    labels = labels.astype(jnp.int32)
    labels_col = labels[:, :, None]                                   # [M, N, 1]
    freq_dist = freq_dist.astype(jnp.float32)
    # TODO(synk): on v5e, bf16 operands (one-hot is exact in bf16) would double
    # MXU rate; kept f32 so the lookup stays bit-exact vs. the f32 table.

    kernel = functools.partial(_freq_lookup_kernel, TS=TS, N=N, L=L, C=C)
    cost = pl.CostEstimate(
        flops=2 * M * N * N * L * C,
        transcendentals=0,
        bytes_accessed=(L * L * C * 4) + 2 * (M * N * 4) + (M * N * N * C * 4),
    )
    return pl.pallas_call(
        kernel,
        out_shape=jax.ShapeDtypeStruct((M, N, N, C), jnp.float32),
        grid_spec=pltpu.PrefetchScalarGridSpec(
            num_scalar_prefetch=1,                 # labels -> SMEM scalar table
            grid=(M, S),
            in_specs=[
                # This image's labels as a sublane column (object one-hot source).
                pl.BlockSpec((1, N, 1), lambda m, s, lbl: (m, 0, 0)),
                # Resident prior: grid-invariant block (pipeline fetches it once).
                # TODO(synk): pipeline_mode=pl.Buffered(1) would drop the second
                # pipeline buffer (~L*L*C*4 bytes); harmless at these sizes.
                pl.BlockSpec((L, L, C), lambda m, s, lbl: (0, 0, 0)),
            ],
            out_specs=pl.BlockSpec((1, TS, N, C), lambda m, s, lbl: (m, s, 0, 0)),
        ),
        compiler_params=pltpu.CompilerParams(
            dimension_semantics=("parallel", "parallel"),
            vmem_limit_bytes=32 * 1024 * 1024,
        ),
        cost_estimate=cost,
    )(labels, labels_col, freq_dist)


class ROIRelationHeadFreqPrior:
    """JAX/Pallas port of ROIRelationHead.forward for the frequency-prior
    inference configuration (eval mode, USE_FREQ_PRIOR=True, no RELPN)."""

    def __init__(self, freq_dist):
        freq = jnp.asarray(freq_dist, jnp.float32)
        # matches: self.freq_dist[:, :, 0] = 0
        freq = freq.at[:, :, 0].set(0.0)
        self.freq_dist = freq                                         # [L, L, C]
        self.num_obj_classes = int(freq.shape[0])
        self.num_pred_classes = int(freq.shape[-1])

    def forward(self, features, proposals, subj_tile=None):
        # `features` is unused on this path (x = None, obj_class_logits = None).
        # TODO(synk): post_processor / loss_evaluator / relpn / rel_predictor are
        # external modules not provided; only the in-module compute is ported.
        x = None

        Ns = [int(b.shape[0]) for b, _ in proposals]
        # TODO(synk): bucket/pad images if proposal counts differ (ragged batches).
        assert len(set(Ns)) == 1, "all images must have the same proposal count"
        N = Ns[0]
        M = len(proposals)
        C = self.num_pred_classes
        P = N * N

        boxes = jnp.stack([b.astype(jnp.float32) for b, _ in proposals], 0)   # [M,N,4]
        labels = jnp.stack([l.astype(jnp.int32) for _, l in proposals], 0)    # [M,N]
        # NOTE: labels must lie in [0, L); out-of-range labels are clamped in the
        # kernel (PyTorch advanced indexing would raise instead).

        logits4 = relation_freq_logits(labels, self.freq_dist,
                                       subj_tile=subj_tile)                   # [M,N,N,C]

        # Static, input-independent pair bookkeeping (host-side numpy).
        nondiag = np.array([p for p in range(P) if p // N != p % N], np.int32)
        idx_pairs = np.stack(
            np.meshgrid(np.arange(N), np.arange(N), indexing="ij"), axis=-1
        ).reshape(P, 2).astype(np.int32)[nondiag]                             # [P-N,2]

        # pred_class_logits, diagonal removed, concatenated over images.
        # Kernel already emits (i, j, c) order -> free reshape + one row gather.
        logits = logits4.reshape(M, P, C)
        logits = jnp.take(logits, jnp.asarray(nondiag), axis=1)               # [M,P-N,C]
        pred_class_logits = logits.reshape(M * (P - N), C)

        # Pair boxes: pure layout broadcast (repeat/tile), diagonal removed.
        box_subj = jnp.broadcast_to(boxes[:, :, None, :], (M, N, N, 4)).reshape(M, P, 4)
        box_obj = jnp.broadcast_to(boxes[:, None, :, :], (M, N, N, 4)).reshape(M, P, 4)
        pair_boxes = jnp.concatenate([box_subj, box_obj], axis=-1)            # [M,P,8]
        pair_boxes = jnp.take(pair_boxes, jnp.asarray(nondiag), axis=1)       # [M,P-N,8]

        proposal_pairs = [
            {"box_pairs": pair_boxes[m], "idx_pairs": jnp.asarray(idx_pairs)}
            for m in range(M)
        ]
        return x, proposal_pairs, pred_class_logits, {}


def _reference_single_image(labels, boxes, freq_dist):
    """Pure-JAX reference replicating the PyTorch semantics."""
    N = labels.shape[0]
    C = freq_dist.shape[-1]
    logits_full = freq_dist[labels][:, labels, :].reshape(N * N, C)
    box_subj = jnp.repeat(boxes, N, axis=0)          # row p = boxes[p // N]
    box_obj = jnp.tile(boxes, (N, 1))                # row p = boxes[p %  N]
    pair_boxes = jnp.concatenate([box_subj, box_obj], axis=1)
    idx = np.stack(np.meshgrid(np.arange(N), np.arange(N), indexing="ij"),
                   axis=-1).reshape(-1, 2).astype(np.int32)
    nondiag = np.array([p for p in range(N * N) if p // N != p % N], np.int32)
    return (logits_full[nondiag], pair_boxes[nondiag], jnp.asarray(idx)[nondiag])


if __name__ == "__main__":
    key = jax.random.PRNGKey(0)
    k_freq, k_b0, k_b1, k_l0, k_l1, k_feat = jax.random.split(key, 6)

    N = 16    # boxes per image (2 subject tiles of 8 -> exercises both grid axes)
    L = 9     # number of object classes (freq prior table side)
    C = 16    # number of predicate classes
    num_images = 2

    freq_dist = jax.random.uniform(k_freq, (L, L, C), dtype=jnp.float32)

    boxes0 = jax.random.uniform(k_b0, (N, 4), dtype=jnp.float32) * 32.0
    boxes1 = jax.random.uniform(k_b1, (N, 4), dtype=jnp.float32) * 32.0
    labels0 = jax.random.randint(k_l0, (N,), 0, L, dtype=jnp.int32)
    labels1 = jax.random.randint(k_l1, (N,), 0, L, dtype=jnp.int32)
    features = [jax.random.normal(k_feat, (num_images, 4, 16, 16),
                                  dtype=jnp.float32)]  # unused on this path

    head = ROIRelationHeadFreqPrior(freq_dist)
    proposals = [(boxes0, labels0), (boxes1, labels1)]

    x, proposal_pairs, pred_class_logits, losses = head.forward(
        features, proposals, subj_tile=8)
    jax.block_until_ready(pred_class_logits)
    for pp in proposal_pairs:
        jax.block_until_ready(pp["box_pairs"])

    # Correctness check against a pure-JAX reference.
    ref_logits = []
    for (boxes, labels), pp in zip(proposals, proposal_pairs):
        rl, rb, ri = _reference_single_image(labels, boxes, head.freq_dist)
        ref_logits.append(rl)
        assert np.allclose(np.asarray(pp["box_pairs"]), np.asarray(rb),
                           atol=1e-5, rtol=1e-5)
        assert np.array_equal(np.asarray(pp["idx_pairs"]), np.asarray(ri))
    assert np.allclose(np.asarray(pred_class_logits),
                       np.asarray(jnp.concatenate(ref_logits, axis=0)),
                       atol=1e-5, rtol=1e-5)
    assert pred_class_logits.shape == (num_images * N * (N - 1), C)

    print("KERNEL_OK")
</pallas_src>

<mosaic_0001>
module attributes {stable_mosaic.version = 11 : i64} {
  func.func @_freq_lookup_kernel(%arg0: i32, %arg1: i32, %arg2: memref<2x16xi32, #tpu.memory_space<smem>>, %arg3: memref<1x16x1xi32, #tpu.memory_space<vmem>>, %arg4: memref<9x9x16xf32, #tpu.memory_space<vmem>>, %arg5: memref<1x8x16x16xf32, #tpu.memory_space<vmem>>) attributes {dimension_semantics = [#tpu.dimension_semantics<parallel>, #tpu.dimension_semantics<parallel>], iteration_bounds = array<i64: 2, 2>, scalar_prefetch = 1 : i64, scratch_operands = 0 : i64, tpu.core_type = #tpu.core_type<tc>, window_params = [{transform_indices = @transform_0, window_bounds = array<i64: 1, 16, 1>}, {pipeline_mode = #tpu.pipeline_mode<synchronous>, transform_indices = @transform_1, window_bounds = array<i64: 9, 9, 16>}, {transform_indices = @transform_2, window_bounds = array<i64: 1, 8, 16, 16>}]} {
    %c0 = arith.constant 0 : index
    %c0_0 = arith.constant 0 : index
    %c0_1 = arith.constant 0 : index
    %0 = vector.load %arg3[%c0, %c0_0, %c0_1] : memref<1x16x1xi32, #tpu.memory_space<vmem>>, vector<1x16x1xi32>
    %1 = vector.shape_cast %0 : vector<1x16x1xi32> to vector<16x1xi32>
    %2 = tpu.iota {dimensions = array<i32: 1>} : vector<16x9xi32>
    %3 = vector.broadcast %1 : vector<16x1xi32> to vector<16x9xi32>
    %4 = arith.cmpi eq, %3, %2 : vector<16x9xi32>
    %5 = arith.extui %4 : vector<16x9xi1> to vector<16x9xi32>
    %6 = arith.sitofp %5 : vector<16x9xi32> to vector<16x9xf32>
    %c0_i32 = arith.constant 0 : i32
    %c8_i32 = arith.constant 8 : i32
    %7 = arith.muli %arg1, %c8_i32 : i32
    %8 = arith.addi %7, %c0_i32 : i32
    %9 = arith.index_cast %arg0 : i32 to index
    %10 = arith.index_cast %8 : i32 to index
    %11 = memref.load %arg2[%9, %10] : memref<2x16xi32, #tpu.memory_space<smem>>
    %c0_i32_2 = arith.constant 0 : i32
    %c8_i32_3 = arith.constant 8 : i32
    %12 = arith.maxsi %c0_i32_2, %11 : i32
    %13 = arith.minsi %c8_i32_3, %12 : i32
    %14 = arith.index_cast %13 : i32 to index
    %c0_4 = arith.constant 0 : index
    %c0_5 = arith.constant 0 : index
    %15 = vector.load %arg4[%14, %c0_4, %c0_5] : memref<9x9x16xf32, #tpu.memory_space<vmem>>, vector<1x9x16xf32>
    %16 = vector.shape_cast %15 : vector<1x9x16xf32> to vector<9x16xf32>
    %cst = arith.constant dense<0.000000e+00> : vector<16x16xf32>
    %17 = tpu.matmul %6, %16, %cst {dimension_numbers = #tpu.dot_dimension_numbers<[1], [0], [0], [1], [0, 0, 1, 1], [], []>} : vector<16x9xf32>, vector<9x16xf32>, vector<16x16xf32> -> vector<16x16xf32>
    %c0_6 = arith.constant 0 : index
    %18 = arith.index_cast %c0_i32 : i32 to index
    %c0_7 = arith.constant 0 : index
    %c0_8 = arith.constant 0 : index
    %19 = vector.load %arg5[%c0_6, %18, %c0_7, %c0_8] : memref<1x8x16x16xf32, #tpu.memory_space<vmem>>, vector<1x1x16x16xf32>
    %20 = vector.shape_cast %19 : vector<1x1x16x16xf32> to vector<16x16xf32>
    %21 = vector.shape_cast %17 : vector<16x16xf32> to vector<1x1x16x16xf32>
    tpu.vector_store %arg5[%c0_6, %18, %c0_7, %c0_8], %21 {strides = array<i32>} : memref<1x8x16x16xf32, #tpu.memory_space<vmem>>, vector<1x1x16x16xf32>,
    %c1_i32 = arith.constant 1 : i32
    %c8_i32_9 = arith.constant 8 : i32
    %22 = arith.muli %arg1, %c8_i32_9 : i32
    %23 = arith.addi %22, %c1_i32 : i32
    %24 = arith.index_cast %arg0 : i32 to index
    %25 = arith.index_cast %23 : i32 to index
    %26 = memref.load %arg2[%24, %25] : memref<2x16xi32, #tpu.memory_space<smem>>
    %c0_i32_10 = arith.constant 0 : i32
    %c8_i32_11 = arith.constant 8 : i32
    %27 = arith.maxsi %c0_i32_10, %26 : i32
    %28 = arith.minsi %c8_i32_11, %27 : i32
    %29 = arith.index_cast %28 : i32 to index
    %c0_12 = arith.constant 0 : index
    %c0_13 = arith.constant 0 : index
    %30 = vector.load %arg4[%29, %c0_12, %c0_13] : memref<9x9x16xf32, #tpu.memory_space<vmem>>, vector<1x9x16xf32>
    %31 = vector.shape_cast %30 : vector<1x9x16xf32> to vector<9x16xf32>
    %cst_14 = arith.constant dense<0.000000e+00> : vector<16x16xf32>
    %32 = tpu.matmul %6, %31, %cst_14 {dimension_numbers = #tpu.dot_dimension_numbers<[1], [0], [0], [1], [0, 0, 1, 1], [], []>} : vector<16x9xf32>, vector<9x16xf32>, vector<16x16xf32> -> vector<16x16xf32>
    %c0_15 = arith.constant 0 : index
    %33 = arith.index_cast %c1_i32 : i32 to index
    %c0_16 = arith.constant 0 : index
    %c0_17 = arith.constant 0 : index
    %34 = vector.load %arg5[%c0_15, %33, %c0_16, %c0_17] : memref<1x8x16x16xf32, #tpu.memory_space<vmem>>, vector<1x1x16x16xf32>
    %35 = vector.shape_cast %34 : vector<1x1x16x16xf32> to vector<16x16xf32>
    %36 = vector.shape_cast %32 : vector<16x16xf32> to vector<1x1x16x16xf32>
    tpu.vector_store %arg5[%c0_15, %33, %c0_16, %c0_17], %36 {strides = array<i32>} : memref<1x8x16x16xf32, #tpu.memory_space<vmem>>, vector<1x1x16x16xf32>,
    %c2_i32 = arith.constant 2 : i32
    %c8_i32_18 = arith.constant 8 : i32
    %37 = arith.muli %arg1, %c8_i32_18 : i32
    %38 = arith.addi %37, %c2_i32 : i32
    %39 = arith.index_cast %arg0 : i32 to index
    %40 = arith.index_cast %38 : i32 to index
    %41 = memref.load %arg2[%39, %40] : memref<2x16xi32, #tpu.memory_space<smem>>
    %c0_i32_19 = arith.constant 0 : i32
    %c8_i32_20 = arith.constant 8 : i32
    %42 = arith.maxsi %c0_i32_19, %41 : i32
    %43 = arith.minsi %c8_i32_20, %42 : i32
    %44 = arith.index_cast %43 : i32 to index
    %c0_21 = arith.constant 0 : index
    %c0_22 = arith.constant 0 : index
    %45 = vector.load %arg4[%44, %c0_21, %c0_22] : memref<9x9x16xf32, #tpu.memory_space<vmem>>, vector<1x9x16xf32>
    %46 = vector.shape_cast %45 : vector<1x9x16xf32> to vector<9x16xf32>
    %cst_23 = arith.constant dense<0.000000e+00> : vector<16x16xf32>
    %47 = tpu.matmul %6, %46, %cst_23 {dimension_numbers = #tpu.dot_dimension_numbers<[1], [0], [0], [1], [0, 0, 1, 1], [], []>} : vector<16x9xf32>, vector<9x16xf32>, vector<16x16xf32> -> vector<16x16xf32>
    %c0_24 = arith.constant 0 : index
    %48 = arith.index_cast %c2_i32 : i32 to index
    %c0_25 = arith.constant 0 : index
    %c0_26 = arith.constant 0 : index
    %49 = vector.load %arg5[%c0_24, %48, %c0_25, %c0_26] : memref<1x8x16x16xf32, #tpu.memory_space<vmem>>, vector<1x1x16x16xf32>
    %50 = vector.shape_cast %49 : vector<1x1x16x16xf32> to vector<16x16xf32>
    %51 = vector.shape_cast %47 : vector<16x16xf32> to vector<1x1x16x16xf32>
    tpu.vector_store %arg5[%c0_24, %48, %c0_25, %c0_26], %51 {strides = array<i32>} : memref<1x8x16x16xf32, #tpu.memory_space<vmem>>, vector<1x1x16x16xf32>,
    %c3_i32 = arith.constant 3 : i32
    %c8_i32_27 = arith.constant 8 : i32
    %52 = arith.muli %arg1, %c8_i32_27 : i32
    %53 = arith.addi %52, %c3_i32 : i32
    %54 = arith.index_cast %arg0 : i32 to index
    %55 = arith.index_cast %53 : i32 to index
    %56 = memref.load %arg2[%54, %55] : memref<2x16xi32, #tpu.memory_space<smem>>
    %c0_i32_28 = arith.constant 0 : i32
    %c8_i32_29 = arith.constant 8 : i32
    %57 = arith.maxsi %c0_i32_28, %56 : i32
    %58 = arith.minsi %c8_i32_29, %57 : i32
    %59 = arith.index_cast %58 : i32 to index
    %c0_30 = arith.constant 0 : index
    %c0_31 = arith.constant 0 : index
    %60 = vector.load %arg4[%59, %c0_30, %c0_31] : memref<9x9x16xf32, #tpu.memory_space<vmem>>, vector<1x9x16xf32>
    %61 = vector.shape_cast %60 : vector<1x9x16xf32> to vector<9x16xf32>
    %cst_32 = arith.constant dense<0.000000e+00> : vector<16x16xf32>
    %62 = tpu.matmul %6, %61, %cst_32 {dimension_numbers = #tpu.dot_dimension_numbers<[1], [0], [0], [1], [0, 0, 1, 1], [], []>} : vector<16x9xf32>, vector<9x16xf32>, vector<16x16xf32> -> vector<16x16xf32>
    %c0_33 = arith.constant 0 : index
    %63 = arith.index_cast %c3_i32 : i32 to index
    %c0_34 = arith.constant 0 : index
    %c0_35 = arith.constant 0 : index
    %64 = vector.load %arg5[%c0_33, %63, %c0_34, %c0_35] : memref<1x8x16x16xf32, #tpu.memory_space<vmem>>, vector<1x1x16x16xf32>
    %65 = vector.shape_cast %64 : vector<1x1x16x16xf32> to vector<16x16xf32>
    %66 = vector.shape_cast %62 : vector<16x16xf32> to vector<1x1x16x16xf32>
    tpu.vector_store %arg5[%c0_33, %63, %c0_34, %c0_35], %66 {strides = array<i32>} : memref<1x8x16x16xf32, #tpu.memory_space<vmem>>, vector<1x1x16x16xf32>,
    %c4_i32 = arith.constant 4 : i32
    %c8_i32_36 = arith.constant 8 : i32
    %67 = arith.muli %arg1, %c8_i32_36 : i32
    %68 = arith.addi %67, %c4_i32 : i32
    %69 = arith.index_cast %arg0 : i32 to index
    %70 = arith.index_cast %68 : i32 to index
    %71 = memref.load %arg2[%69, %70] : memref<2x16xi32, #tpu.memory_space<smem>>
    %c0_i32_37 = arith.constant 0 : i32
    %c8_i32_38 = arith.constant 8 : i32
    %72 = arith.maxsi %c0_i32_37, %71 : i32
    %73 = arith.minsi %c8_i32_38, %72 : i32
    %74 = arith.index_cast %73 : i32 to index
    %c0_39 = arith.constant 0 : index
    %c0_40 = arith.constant 0 : index
    %75 = vector.load %arg4[%74, %c0_39, %c0_40] : memref<9x9x16xf32, #tpu.memory_space<vmem>>, vector<1x9x16xf32>
    %76 = vector.shape_cast %75 : vector<1x9x16xf32> to vector<9x16xf32>
    %cst_41 = arith.constant dense<0.000000e+00> : vector<16x16xf32>
    %77 = tpu.matmul %6, %76, %cst_41 {dimension_numbers = #tpu.dot_dimension_numbers<[1], [0], [0], [1], [0, 0, 1, 1], [], []>} : vector<16x9xf32>, vector<9x16xf32>, vector<16x16xf32> -> vector<16x16xf32>
    %c0_42 = arith.constant 0 : index
    %78 = arith.index_cast %c4_i32 : i32 to index
    %c0_43 = arith.constant 0 : index
    %c0_44 = arith.constant 0 : index
    %79 = vector.load %arg5[%c0_42, %78, %c0_43, %c0_44] : memref<1x8x16x16xf32, #tpu.memory_space<vmem>>, vector<1x1x16x16xf32>
    %80 = vector.shape_cast %79 : vector<1x1x16x16xf32> to vector<16x16xf32>
    %81 = vector.shape_cast %77 : vector<16x16xf32> to vector<1x1x16x16xf32>
    tpu.vector_store %arg5[%c0_42, %78, %c0_43, %c0_44], %81 {strides = array<i32>} : memref<1x8x16x16xf32, #tpu.memory_space<vmem>>, vector<1x1x16x16xf32>,
    %c5_i32 = arith.constant 5 : i32
    %c8_i32_45 = arith.constant 8 : i32
    %82 = arith.muli %arg1, %c8_i32_45 : i32
    %83 = arith.addi %82, %c5_i32 : i32
    %84 = arith.index_cast %arg0 : i32 to index
    %85 = arith.index_cast %83 : i32 to index
    %86 = memref.load %arg2[%84, %85] : memref<2x16xi32, #tpu.memory_space<smem>>
    %c0_i32_46 = arith.constant 0 : i32
    %c8_i32_47 = arith.constant 8 : i32
    %87 = arith.maxsi %c0_i32_46, %86 : i32
    %88 = arith.minsi %c8_i32_47, %87 : i32
    %89 = arith.index_cast %88 : i32 to index
    %c0_48 = arith.constant 0 : index
    %c0_49 = arith.constant 0 : index
    %90 = vector.load %arg4[%89, %c0_48, %c0_49] : memref<9x9x16xf32, #tpu.memory_space<vmem>>, vector<1x9x16xf32>
    %91 = vector.shape_cast %90 : vector<1x9x16xf32> to vector<9x16xf32>
    %cst_50 = arith.constant dense<0.000000e+00> : vector<16x16xf32>
    %92 = tpu.matmul %6, %91, %cst_50 {dimension_numbers = #tpu.dot_dimension_numbers<[1], [0], [0], [1], [0, 0, 1, 1], [], []>} : vector<16x9xf32>, vector<9x16xf32>, vector<16x16xf32> -> vector<16x16xf32>
    %c0_51 = arith.constant 0 : index
    %93 = arith.index_cast %c5_i32 : i32 to index
    %c0_52 = arith.constant 0 : index
    %c0_53 = arith.constant 0 : index
    %94 = vector.load %arg5[%c0_51, %93, %c0_52, %c0_53] : memref<1x8x16x16xf32, #tpu.memory_space<vmem>>, vector<1x1x16x16xf32>
    %95 = vector.shape_cast %94 : vector<1x1x16x16xf32> to vector<16x16xf32>
    %96 = vector.shape_cast %92 : vector<16x16xf32> to vector<1x1x16x16xf32>
    tpu.vector_store %arg5[%c0_51, %93, %c0_52, %c0_53], %96 {strides = array<i32>} : memref<1x8x16x16xf32, #tpu.memory_space<vmem>>, vector<1x1x16x16xf32>,
    %c6_i32 = arith.constant 6 : i32
    %c8_i32_54 = arith.constant 8 : i32
    %97 = arith.muli %arg1, %c8_i32_54 : i32
    %98 = arith.addi %97, %c6_i32 : i32
    %99 = arith.index_cast %arg0 : i32 to index
    %100 = arith.index_cast %98 : i32 to index
    %101 = memref.load %arg2[%99, %100] : memref<2x16xi32, #tpu.memory_space<smem>>
    %c0_i32_55 = arith.constant 0 : i32
    %c8_i32_56 = arith.constant 8 : i32
    %102 = arith.maxsi %c0_i32_55, %101 : i32
    %103 = arith.minsi %c8_i32_56, %102 : i32
    %104 = arith.index_cast %103 : i32 to index
    %c0_57 = arith.constant 0 : index
    %c0_58 = arith.constant 0 : index
    %105 = vector.load %arg4[%104, %c0_57, %c0_58] : memref<9x9x16xf32, #tpu.memory_space<vmem>>, vector<1x9x16xf32>
    %106 = vector.shape_cast %105 : vector<1x9x16xf32> to vector<9x16xf32>
    %cst_59 = arith.constant dense<0.000000e+00> : vector<16x16xf32>
    %107 = tpu.matmul %6, %106, %cst_59 {dimension_numbers = #tpu.dot_dimension_numbers<[1], [0], [0], [1], [0, 0, 1, 1], [], []>} : vector<16x9xf32>, vector<9x16xf32>, vector<16x16xf32> -> vector<16x16xf32>
    %c0_60 = arith.constant 0 : index
    %108 = arith.index_cast %c6_i32 : i32 to index
    %c0_61 = arith.constant 0 : index
    %c0_62 = arith.constant 0 : index
    %109 = vector.load %arg5[%c0_60, %108, %c0_61, %c0_62] : memref<1x8x16x16xf32, #tpu.memory_space<vmem>>, vector<1x1x16x16xf32>
    %110 = vector.shape_cast %109 : vector<1x1x16x16xf32> to vector<16x16xf32>
    %111 = vector.shape_cast %107 : vector<16x16xf32> to vector<1x1x16x16xf32>
    tpu.vector_store %arg5[%c0_60, %108, %c0_61, %c0_62], %111 {strides = array<i32>} : memref<1x8x16x16xf32, #tpu.memory_space<vmem>>, vector<1x1x16x16xf32>,
    %c7_i32 = arith.constant 7 : i32
    %c8_i32_63 = arith.constant 8 : i32
    %112 = arith.muli %arg1, %c8_i32_63 : i32
    %113 = arith.addi %112, %c7_i32 : i32
    %114 = arith.index_cast %arg0 : i32 to index
    %115 = arith.index_cast %113 : i32 to index
    %116 = memref.load %arg2[%114, %115] : memref<2x16xi32, #tpu.memory_space<smem>>
    %c0_i32_64 = arith.constant 0 : i32
    %c8_i32_65 = arith.constant 8 : i32
    %117 = arith.maxsi %c0_i32_64, %116 : i32
    %118 = arith.minsi %c8_i32_65, %117 : i32
    %119 = arith.index_cast %118 : i32 to index
    %c0_66 = arith.constant 0 : index
    %c0_67 = arith.constant 0 : index
    %120 = vector.load %arg4[%119, %c0_66, %c0_67] : memref<9x9x16xf32, #tpu.memory_space<vmem>>, vector<1x9x16xf32>
    %121 = vector.shape_cast %120 : vector<1x9x16xf32> to vector<9x16xf32>
    %cst_68 = arith.constant dense<0.000000e+00> : vector<16x16xf32>
    %122 = tpu.matmul %6, %121, %cst_68 {dimension_numbers = #tpu.dot_dimension_numbers<[1], [0], [0], [1], [0, 0, 1, 1], [], []>} : vector<16x9xf32>, vector<9x16xf32>, vector<16x16xf32> -> vector<16x16xf32>
    %c0_69 = arith.constant 0 : index
    %123 = arith.index_cast %c7_i32 : i32 to index
    %c0_70 = arith.constant 0 : index
    %c0_71 = arith.constant 0 : index
    %124 = vector.load %arg5[%c0_69, %123, %c0_70, %c0_71] : memref<1x8x16x16xf32, #tpu.memory_space<vmem>>, vector<1x1x16x16xf32>
    %125 = vector.shape_cast %124 : vector<1x1x16x16xf32> to vector<16x16xf32>
    %126 = vector.shape_cast %122 : vector<16x16xf32> to vector<1x1x16x16xf32>
    tpu.vector_store %arg5[%c0_69, %123, %c0_70, %c0_71], %126 {strides = array<i32>} : memref<1x8x16x16xf32, #tpu.memory_space<vmem>>, vector<1x1x16x16xf32>,
    %c8_i32_72 = arith.constant 8 : i32
    return
  }
  func.func @transform_0(%arg0: i32, %arg1: i32, %arg2: memref<2x16xi32, #tpu.memory_space<smem>>) -> (i32, i32, i32) {
    %c0_i32 = arith.constant 0 : i32
    %c0_i32_0 = arith.constant 0 : i32
    %c0_i32_1 = arith.constant 0 : i32
    return %arg0, %c0_i32, %c0_i32_0 : i32, i32, i32
  }
  func.func @transform_1(%arg0: i32, %arg1: i32, %arg2: memref<2x16xi32, #tpu.memory_space<smem>>) -> (i32, i32, i32) {
    %c0_i32 = arith.constant 0 : i32
    %c0_i32_0 = arith.constant 0 : i32
    %c0_i32_1 = arith.constant 0 : i32
    %c0_i32_2 = arith.constant 0 : i32
    return %c0_i32, %c0_i32_0, %c0_i32_1 : i32, i32, i32
  }
  func.func @transform_2(%arg0: i32, %arg1: i32, %arg2: memref<2x16xi32, #tpu.memory_space<smem>>) -> (i32, i32, i32, i32) {
    %c0_i32 = arith.constant 0 : i32
    %c0_i32_0 = arith.constant 0 : i32
    %c0_i32_1 = arith.constant 0 : i32
    return %arg0, %arg1, %c0_i32, %c0_i32_0 : i32, i32, i32, i32
  }
}

</mosaic_0001>

<llo_original>
// kernel: tpu_custom_call.1
$region0: #{tpu_custom_call.1}
  #allocation0 [shape = 'u32[]', space=smem, size = 0x4, offset = 0x4, fixed_abs, tag = 'smem constant byte address 0x4 - core index']
  #allocation1 [shape = 'u32[144,128]{1,0:T(1,128)}', space=vmem, size = 0x12000, scoped, tag = 'internal scratch']
  #allocation2 [shape = 's32[1]{0}', space=sflag, size = 0x4, scoped, tag = 'scoped memory for tpu_custom_call.1']
  #allocation3 [shape = 'u8[1024]{0}', space=smem, size = 0x400, scoped, tag = 'prefetched SMEM operand 0']
  %s0 = inlined_call_operand.vmem [shape: s32[2,16], index: 0, kind: input, shape index: {}]
  %s1 = inlined_call_operand.vmem [shape: s32[2,16,1], index: 1, kind: input, shape index: {}]
  %s2 = inlined_call_operand.hbm [shape: f32[9,9,16], index: 2, kind: input, shape index: {}]
  %s3 = inlined_call_operand.hbm [shape: f32[2,16,16,16], index: 3, kind: output, shape index: {}]
  %s4 = sld [smem:[#allocation0]]
  $region45: #{tpu_custom_call.1} parent=0
    _
  %s6 = ssub.s32 1, %s4
  %s7 = scalar_select 0, %s6, %s4
  %s8 = sshll.u32 %s0, 4
  %s9 = int_to_ptr.vmem [resolvable:$true] %s8
  %11 = dma.vmem_to_smem %s9, 32, [#allocation3], [#allocation2]
  %12 = dma.done [#allocation2], 32
  %13 = sfence
  $region1: #{tpu_custom_call.1} parent=0
    #allocation4 [shape = 'u8[73728]{0}', space=vmem, size = 0x12000, scoped, tag = 'input window, operand 2, single buffered']
    #allocation5 [shape = 's32[2]{0}', space=sflag, size = 0x8, scoped, tag = 'scoped memory for tpu_custom_call.1']
    #allocation6 [shape = 's32[2]{0}', space=sflag, size = 0x8, scoped, tag = 'scoped memory for tpu_custom_call.1']
    #allocation7 [shape = 'u8[131072]{0}', space=vmem, size = 0x20000, scoped, tag = 'output window, operand 0']
    %14 = vsyncpa [#allocation5], 0
    %15 = vsyncpa [#allocation6], 0
    %s16 = scalar_lea.sflag [#allocation6], 1
    %17 = vsyncpa %s16, 0
    loop: start=0, step=1, limit=6
    $region2: #{tpu_custom_call.1} parent=1 // loop_pre_header
      _
    $region3: #{tpu_custom_call.1} parent=1 // loop_header
      %s19 = sphi 0, %s23
      %p20 = scmp.ge.s32.totalorder %s19, 6
      %s26 = sphi 0, %s38
      %s27 = sphi 0, %s34
      %s28 = sphi 0, %s26
      %s29 = sphi 0, %s27
      %s30 = sphi 0, %s28
      %s31 = sphi 0, %s29
      %s41 = sphi 0, %s43
      %s44 = sphi 0, %s41
      %s45 = sphi 0, %s44
      %s61 = sphi 0, %s45
      %s65 = sphi 0, %s65
      %s67 = sphi 0, %s65
      %s68 = sphi 0, %s67
      %s82 = sphi 0, %s68
      %s90 = sphi 0, %s92
      %s93 = sphi 0, %s90
      %s94 = sphi 0, %s93
      %s110 = sphi 0, %s94
    $region4: #{tpu_custom_call.1} parent=1 // loop_header_branch
      %22 = sbr.rel (%p20) target = $region8
    $region5: #{tpu_custom_call.1} parent=1 // loop_body
      %s24 = ssub.s32 %s19, 1
      %s25 = ssub.s32 %s19, 2
      %s32 = sadd.s32 1, %s27
      %p33 = scmp.ge.s32.totalorder %s32, 2
      %s34 = scalar_select %p33, 0, %s32
      %s35 = sadd.s32 1, %s26
      %s36 = scalar_select %p33, %s35, %s26
      %p37 = scmp.ge.s32.totalorder %s36, 2
      %s38 = scalar_select %p37, 0, %s36
      %s39 = ssub.s32 %s26, %s38
      %p40 = scmp.eq.s32.totalorder %s39, 0
      %s42 = sadd.s32 %s41, 1
      %s43 = scalar_select %p40, %s41, %s42
      %p46 = pneg %p40
      %p47 = scmp.eq.s32.totalorder %s19, 3
      %p48 = por %p46, %p47
      %p49 = scmp.ne.s32.totalorder %s41, %s44
      %p50 = scmp.eq.s32.totalorder %s19, 0
      %p51 = por %p49, %p50
      %p52 = scmp.ne.s32.totalorder %s41, %s44
      %p53 = scmp.eq.s32.totalorder %s24, 3
      %p54 = por %p52, %p53
      %p55 = scmp.ne.s32.totalorder %s44, %s45
      %p56 = scmp.eq.s32.totalorder %s24, 0
      %p57 = por %p55, %p56
      %p58 = scmp.ne.s32.totalorder %s44, %s45
      %p59 = scmp.eq.s32.totalorder %s25, 3
      %p60 = por %p58, %p59
      %p62 = scmp.ne.s32.totalorder %s45, %s61
      %p63 = scmp.eq.s32.totalorder %s25, 0
      %p64 = por %p62, %p63
      %s66 = sadd.s32 %s65, 1
      %p69 = scmp.eq.s32.totalorder %s19, 3
      %p70 = scmp.ne.s32.totalorder %s65, %s67
      %p71 = scmp.eq.s32.totalorder %s19, 0
      %p72 = por %p70, %p71
      %p73 = scmp.ne.s32.totalorder %s65, %s67
      %p74 = scmp.eq.s32.totalorder %s24, 3
      %p75 = por %p73, %p74
      %p76 = scmp.ne.s32.totalorder %s67, %s68
      %p77 = scmp.eq.s32.totalorder %s24, 0
      %p78 = por %p76, %p77
      %p79 = scmp.ne.s32.totalorder %s67, %s68
      %p80 = scmp.eq.s32.totalorder %s25, 3
      %p81 = por %p79, %p80
      %p83 = scmp.ne.s32.totalorder %s68, %s82
      %p84 = scmp.eq.s32.totalorder %s25, 0
      %p85 = por %p83, %p84
      %s86 = ssub.s32 %s26, %s38
      %s87 = ssub.s32 %s27, %s34
      %s88 = sor.u32 %s86, %s87
      %p89 = scmp.eq.s32.totalorder %s88, 0
      %s91 = sadd.s32 %s90, 1
      %s92 = scalar_select %p89, %s90, %s91
      %p95 = pneg %p89
      %p96 = scmp.eq.s32.totalorder %s19, 3
      %p97 = por %p95, %p96
      %p98 = scmp.ne.s32.totalorder %s90, %s93
      %p99 = scmp.eq.s32.totalorder %s19, 0
      %p100 = por %p98, %p99
      %p101 = scmp.ne.s32.totalorder %s90, %s93
      %p102 = scmp.eq.s32.totalorder %s24, 3
      %p103 = por %p101, %p102
      %p104 = scmp.ne.s32.totalorder %s93, %s94
      %p105 = scmp.eq.s32.totalorder %s24, 0
      %p106 = por %p104, %p105
      %p107 = scmp.ne.s32.totalorder %s93, %s94
      %p108 = scmp.eq.s32.totalorder %s25, 3
      %p109 = por %p107, %p108
      %p111 = scmp.ne.s32.totalorder %s94, %s110
      %p112 = scmp.eq.s32.totalorder %s25, 0
      %p113 = por %p111, %p112
      %p114 = scmp.le.s32.totalorder 1, %s19
      %p115 = scmp.lt.s32.totalorder %s19, 5
      %p116 = pnand %p114, %p115
      %p117 = pneg %p116
      // Predicated region
      $region9: #{tpu_custom_call.1} parent=5 // pred_check
        _
      $region10: #{tpu_custom_call.1} parent=5 // pred_check_branch
        %119 = sbr.rel (%p116) target = $region12
      $region11: #{tpu_custom_call.1} parent=5 // pred_region
        %s120 = ssub.s32 %s19, 1
        // Predicated region
        $region13: #{tpu_custom_call.1} parent=11 // pred_check
          %p121 = pneg %p78
        $region14: #{tpu_custom_call.1} parent=11 // pred_check_branch
          %123 = sbr.rel (%p121) target = $region16
        $region15: #{tpu_custom_call.1} parent=11 // pred_region
          %s125 = ssub.s32 2304, 2304
          %126 = vsyncadd [#allocation5], %s125
          %s127 = sshll.u32 [#allocation4], 4
          %s128 = int_to_ptr.vmem [resolvable:$true] %s127
          %133 = dma.hbm_to_vmem [thread:$0]  %s2, 2304, %s128, [#allocation5], 128, 128, 8
        $region16: #{tpu_custom_call.1} parent=11 // pred_fallthru
          _
      $region12: #{tpu_custom_call.1} parent=5 // pred_fallthru
        _
      %p134 = scmp.lt.s32.totalorder %s19, 4
      // Predicated region
      $region17: #{tpu_custom_call.1} parent=5 // pred_check
        %p135 = pneg %p134
      $region18: #{tpu_custom_call.1} parent=5 // pred_check_branch
        %137 = sbr.rel (%p135) target = $region20
      $region19: #{tpu_custom_call.1} parent=5 // pred_region
        // Predicated region
        $region21: #{tpu_custom_call.1} parent=19 // pred_check
          %p138 = pneg %p51
        $region22: #{tpu_custom_call.1} parent=19 // pred_check_branch
          %140 = sbr.rel (%p138) target = $region24
        $region23: #{tpu_custom_call.1} parent=19 // pred_region
          %p141 = scmp.lt.s32.totalorder %s26, 1
          %s142 = scalar_select %p141, %s26, 1
          %s143 = smul.addr %s142, 2
          %s144 = smul.addr %s143, 8
          %s145 = scalar_lea.vmem %s1, %s144
        $region24: #{tpu_custom_call.1} parent=19 // pred_fallthru
          _
      $region20: #{tpu_custom_call.1} parent=5 // pred_fallthru
        _
      %p146 = scmp.le.s32.totalorder 1, %s19
      %p147 = scmp.lt.s32.totalorder %s19, 5
      %p148 = pnand %p146, %p147
      %p149 = pneg %p148
      // Predicated region
      $region25: #{tpu_custom_call.1} parent=5 // pred_check
        _
      $region26: #{tpu_custom_call.1} parent=5 // pred_check_branch
        %151 = sbr.rel (%p148) target = $region28
      $region27: #{tpu_custom_call.1} parent=5 // pred_region
        %s152 = ssub.s32 %s19, 1
        // Predicated region
        $region29: #{tpu_custom_call.1} parent=27 // pred_check
          %p153 = pneg %p78
        $region30: #{tpu_custom_call.1} parent=27 // pred_check_branch
          %155 = sbr.rel (%p153) target = $region32
        $region31: #{tpu_custom_call.1} parent=27 // pred_region
          %156 = dma.done [#allocation5], 2304
        $region32: #{tpu_custom_call.1} parent=27 // pred_fallthru
          _
        %p157 = scmp.lt.s32.totalorder %s28, 1
        %s158 = scalar_select %p157, %s28, 1
        %s159 = smul.addr %s158, 2
        %s160 = smul.addr %s159, 8
        %s161 = scalar_lea.vmem %s1, %s160
        %p162 = pneg %p57
        %p163 = pneg %p54
        %p164 = pneg %p78
        %p165 = pneg %p75
        %p166 = pneg %p106
        %p167 = pneg %p103
        %s168 = sand.u32 %s93, 1
        %s169 = scalar_lea.sflag [#allocation6], %s168
        %s170 = sand.u32 %s93, 1
        %s171 = smul.addr %s170, 128
        %s172 = scalar_lea.vmem [#allocation7], %s171
        %p173 = scmp.lt.s32.totalorder %s28, 1
        %s174 = scalar_select %p173, %s28, 1
        %s175 = smul.addr %s174, 2
        %s176 = smul.addr %s175, 8
        %s177 = scalar_lea.vmem %s1, %s176
        %s178 = smul.u32 8, %s29
        %v179 = vld [vmem:[%s177] sm:$0xff]
        %v180 = vld [vmem:[%s177 + $0x8] sm:$0xff]
        %v181 = vlaneseq
        %v182 = vand.u32 %v181, 127
        %183 = vset.pattern.permute.xlu0 0
        %184 = vperm.xlu0 %183, %v179
        %v185 = vpop.permute.xlu0 %184
        %186 = vset.pattern.permute.xlu0 0
        %187 = vperm.xlu0 %186, %v180
        %v188 = vpop.permute.xlu0 %187
        %vm189 = vcmp.eq.s32.totalorder %v185, %v182
        %vm190 = vcmp.eq.s32.totalorder %v188, %v182
        %v191 = vsel %vm189, 1, 0
        %v192 = vsel %vm190, 1, 0
        %v193 = vcvt.s32.f32 %v191
        %v194 = vcvt.s32.f32 %v192
        %s195 = smul.u32 %s29, 8
        %s196 = sshra.s32 %s195, 7
        %s197 = sand.u32 %s195, 127
        %s198 = sadd.s32 %s196, %s28
        %s199 = smul.u32 %s198, 128
        %s200 = sshra.s32 %s195, 7
        %s201 = sand.u32 %s195, 127
        %s202 = sadd.s32 %s199, %s201
        %s203 = sld [smem:[#allocation3 + %s202]]
        %p204 = scmp.gt.s32.totalorder %s203, 0
        %s205 = scalar_select %p204, %s203, 0
        %p206 = scmp.lt.s32.totalorder %s205, 8
        %s207 = scalar_select %p206, %s205, 8
        %s208 = smul.u32 %s207, 16
        %s209 = scalar_lea.vmem [#allocation4], %s208
        %v210 = vld [vmem:[%s209] sm:$0xff]
        %v211 = vld [vmem:[%s209 + $0x8] sm:$0x1]
        %vm212 = vcmask 72704
        %v214 = vsel %vm212, %v193, 0
        %v217 = vsel %vm212, %v194, 0
        %vm219 = vcmask 1040384
        %v221 = vsel %vm219, %v211, 0
        %223 = vmatprep.subr.mxu0 0.0
        %224 = vmatpush1.msra.mxu0 %v210
        %225 = vmatprep.subr.mxu0 0.0
        %226 = vmatpush1.msra.mxu0 %v221
        %227 = vmatprep.subr.mxu0 0.0
        %228 = vmatpush1.msra.mxu0 0.0
        %229 = vmatprep.subr.mxu0 0.0
        %230 = vmatpush1.msra.mxu0 0.0
        %231 = vmatprep.subr.mxu0 0.0
        %232 = vmatpush1.msra.mxu0 0.0
        %233 = vmatprep.subr.mxu0 0.0
        %234 = vmatpush1.msra.mxu0 0.0
        %235 = vmatprep.subr.mxu0 0.0
        %236 = vmatpush1.msra.mxu0 0.0
        %237 = vmatprep.subr.mxu0 0.0
        %238 = vmatpush1.msra.mxu0 0.0
        %239 = vmatprep.subr.mxu0 0.0
        %240 = vmatpush1.msra.mxu0 0.0
        %241 = vmatprep.subr.mxu0 0.0
        %242 = vmatpush1.msra.mxu0 0.0
        %243 = vmatprep.subr.mxu0 0.0
        %244 = vmatpush1.msra.mxu0 0.0
        %245 = vmatprep.subr.mxu0 0.0
        %246 = vmatpush1.msra.mxu0 0.0
        %247 = vmatprep.subr.mxu0 0.0
        %248 = vmatpush1.msra.mxu0 0.0
        %249 = vmatprep.subr.mxu0 0.0
        %250 = vmatpush1.msra.mxu0 0.0
        %251 = vmatprep.subr.mxu0 0.0
        %252 = vmatpush1.msra.mxu0 0.0
        %253 = vmatprep.subr.mxu0 0.0
        %254 = vmatpush1.msra.mxu0 0.0
        %255 = vmatprep.subr.mxu0 0.0
        %256 = vmatpush1.msra.mxu0 0.0
        %257 = vmatprep.subr.mxu0 0.0
        %258 = vmatpush1.msra.mxu0 0.0
        %259 = vmatprep.subr.mxu0 0.0
        %260 = vmatpush1.msra.mxu0 0.0
        %261 = vmatprep.subr.mxu0 0.0
        %262 = vmatpush1.msra.mxu0 0.0
        %263 = vmatprep.subr.mxu0 0.0
        %264 = vmatpush1.msra.mxu0 0.0
        %265 = vmatprep.subr.mxu0 0.0
        %266 = vmatpush1.msra.mxu0 0.0
        %267 = vmatprep.subr.mxu0 0.0
        %268 = vmatpush1.msra.mxu0 0.0
        %269 = vmatprep.subr.mxu0 0.0
        %270 = vmatpush1.msra.mxu0 0.0
        %271 = vmatprep.subr.mxu0 0.0
        %272 = vmatpush1.msra.mxu0 0.0
        %273 = vmatprep.subr.mxu0 0.0
        %274 = vmatpush1.msra.mxu0 0.0
        %275 = vmatprep.subr.mxu0 0.0
        %276 = vmatpush1.msra.mxu0 0.0
        %277 = vmatprep.subr.mxu0 0.0
        %278 = vmatpush1.msra.mxu0 0.0
        %279 = vmatprep.subr.mxu0 0.0
        %280 = vmatpush1.msra.mxu0 0.0
        %281 = vmatprep.subr.mxu0 0.0
        %282 = vmatpush1.msra.mxu0 0.0
        %283 = vmatprep.subr.mxu0 0.0
        %284 = vmatpush1.msra.mxu0 0.0
        %285 = vmatprep.subr.mxu0 0.0
        %286 = vmatpush1.msra.mxu0 0.0
        %287 = vmatprep.mubr.f32.mxu0 0.0
        %288 = vmatmul.mubr.f32.gmra.mrb[0].mxu0 %v214
        %v289 = vpop.f32.mrb[0].mxu0
        %v290 = vadd.f32 0.0, %v289
        %v291 = vpop.f32.mrb[0].mxu0
        %292 = vmatprep.mubr.f32.mxu0 0.0
        %293 = vmatmul.mubr.f32.gmra.mrb[0].mxu0 %v217
        %v294 = vpop.f32.mrb[0].mxu0
        %v295 = vadd.f32 0.0, %v294
        %v296 = vpop.f32.mrb[0].mxu0
        %297 = vdwg.mxu0
        %vm298 = vcmask 130048
        %299 = vst.msk [vmem:[%s172] sm:$0xff] %vm298, %v290
        %300 = vst.msk [vmem:[%s172 + $0x8] sm:$0xff] %vm298, %v295
        %s301 = sadd.s32 %s195, 1
        %s302 = sshra.s32 %s301, 7
        %s303 = sand.u32 %s301, 127
        %s304 = sadd.s32 %s302, %s28
        %s305 = smul.u32 %s304, 128
        %s306 = sshra.s32 %s301, 7
        %s307 = sand.u32 %s301, 127
        %s308 = sadd.s32 %s305, %s307
        %s309 = sld [smem:[#allocation3 + %s308]]
        %p310 = scmp.gt.s32.totalorder %s309, 0
        %s311 = scalar_select %p310, %s309, 0
        %p312 = scmp.lt.s32.totalorder %s311, 8
        %s313 = scalar_select %p312, %s311, 8
        %s314 = smul.u32 %s313, 16
        %s315 = scalar_lea.vmem [#allocation4], %s314
        %v316 = vld [vmem:[%s315] sm:$0xff]
        %v317 = vld [vmem:[%s315 + $0x8] sm:$0x1]
        %v319 = vsel %vm219, %v317, 0
        %321 = vmatprep.subr.mxu0 0.0
        %322 = vmatpush1.msra.mxu0 %v316
        %323 = vmatprep.subr.mxu0 0.0
        %324 = vmatpush1.msra.mxu0 %v319
        %325 = vmatprep.subr.mxu0 0.0
        %326 = vmatpush1.msra.mxu0 0.0
        %327 = vmatprep.subr.mxu0 0.0
        %328 = vmatpush1.msra.mxu0 0.0
        %329 = vmatprep.subr.mxu0 0.0
        %330 = vmatpush1.msra.mxu0 0.0
        %331 = vmatprep.subr.mxu0 0.0
        %332 = vmatpush1.msra.mxu0 0.0
        %333 = vmatprep.subr.mxu0 0.0
        %334 = vmatpush1.msra.mxu0 0.0
        %335 = vmatprep.subr.mxu0 0.0
        %336 = vmatpush1.msra.mxu0 0.0
        %337 = vmatprep.subr.mxu0 0.0
        %338 = vmatpush1.msra.mxu0 0.0
        %339 = vmatprep.subr.mxu0 0.0
        %340 = vmatpush1.msra.mxu0 0.0
        %341 = vmatprep.subr.mxu0 0.0
        %342 = vmatpush1.msra.mxu0 0.0
        %343 = vmatprep.subr.mxu0 0.0
        %344 = vmatpush1.msra.mxu0 0.0
        %345 = vmatprep.subr.mxu0 0.0
        %346 = vmatpush1.msra.mxu0 0.0
        %347 = vmatprep.subr.mxu0 0.0
        %348 = vmatpush1.msra.mxu0 0.0
        %349 = vmatprep.subr.mxu0 0.0
        %350 = vmatpush1.msra.mxu0 0.0
        %351 = vmatprep.subr.mxu0 0.0
        %352 = vmatpush1.msra.mxu0 0.0
        %353 = vmatprep.subr.mxu0 0.0
        %354 = vmatpush1.msra.mxu0 0.0
        %355 = vmatprep.subr.mxu0 0.0
        %356 = vmatpush1.msra.mxu0 0.0
        %357 = vmatprep.subr.mxu0 0.0
        %358 = vmatpush1.msra.mxu0 0.0
        %359 = vmatprep.subr.mxu0 0.0
        %360 = vmatpush1.msra.mxu0 0.0
        %361 = vmatprep.subr.mxu0 0.0
        %362 = vmatpush1.msra.mxu0 0.0
        %363 = vmatprep.subr.mxu0 0.0
        %364 = vmatpush1.msra.mxu0 0.0
        %365 = vmatprep.subr.mxu0 0.0
        %366 = vmatpush1.msra.mxu0 0.0
        %367 = vmatprep.subr.mxu0 0.0
        %368 = vmatpush1.msra.mxu0 0.0
        %369 = vmatprep.subr.mxu0 0.0
        %370 = vmatpush1.msra.mxu0 0.0
        %371 = vmatprep.subr.mxu0 0.0
        %372 = vmatpush1.msra.mxu0 0.0
        %373 = vmatprep.subr.mxu0 0.0
        %374 = vmatpush1.msra.mxu0 0.0
        %375 = vmatprep.subr.mxu0 0.0
        %376 = vmatpush1.msra.mxu0 0.0
        %377 = vmatprep.subr.mxu0 0.0
        %378 = vmatpush1.msra.mxu0 0.0
        %379 = vmatprep.subr.mxu0 0.0
        %380 = vmatpush1.msra.mxu0 0.0
        %381 = vmatprep.subr.mxu0 0.0
        %382 = vmatpush1.msra.mxu0 0.0
        %383 = vmatprep.subr.mxu0 0.0
        %384 = vmatpush1.msra.mxu0 0.0
        %385 = vmatprep.mubr.f32.mxu0 0.0
        %386 = vmatmul.mubr.f32.gmra.mrb[0].mxu0 %v214
        %v387 = vpop.f32.mrb[0].mxu0
        %v388 = vadd.f32 0.0, %v387
        %v389 = vpop.f32.mrb[0].mxu0
        %390 = vmatprep.mubr.f32.mxu0 0.0
        %391 = vmatmul.mubr.f32.gmra.mrb[0].mxu0 %v217
        %v392 = vpop.f32.mrb[0].mxu0
        %v393 = vadd.f32 0.0, %v392
        %v394 = vpop.f32.mrb[0].mxu0
        %395 = vdwg.mxu0
        %s396 = scalar_lea.vmem %s172, 16 [#allocation7]
        %397 = vst.msk [vmem:[%s396] sm:$0xff] %vm298, %v388
        %398 = vst.msk [vmem:[%s396 + $0x8] sm:$0xff] %vm298, %v393
        %s399 = sadd.s32 %s195, 2
        %s400 = sshra.s32 %s399, 7
        %s401 = sand.u32 %s399, 127
        %s402 = sadd.s32 %s400, %s28
        %s403 = smul.u32 %s402, 128
        %s404 = sshra.s32 %s399, 7
        %s405 = sand.u32 %s399, 127
        %s406 = sadd.s32 %s403, %s405
        %s407 = sld [smem:[#allocation3 + %s406]]
        %p408 = scmp.gt.s32.totalorder %s407, 0
        %s409 = scalar_select %p408, %s407, 0
        %p410 = scmp.lt.s32.totalorder %s409, 8
        %s411 = scalar_select %p410, %s409, 8
        %s412 = smul.u32 %s411, 16
        %s413 = scalar_lea.vmem [#allocation4], %s412
        %v414 = vld [vmem:[%s413] sm:$0xff]
        %v415 = vld [vmem:[%s413 + $0x8] sm:$0x1]
        %v417 = vsel %vm219, %v415, 0
        %419 = vmatprep.subr.mxu0 0.0
        %420 = vmatpush1.msra.mxu0 %v414
        %421 = vmatprep.subr.mxu0 0.0
        %422 = vmatpush1.msra.mxu0 %v417
        %423 = vmatprep.subr.mxu0 0.0
        %424 = vmatpush1.msra.mxu0 0.0
        %425 = vmatprep.subr.mxu0 0.0
        %426 = vmatpush1.msra.mxu0 0.0
        %427 = vmatprep.subr.mxu0 0.0
        %428 = vmatpush1.msra.mxu0 0.0
        %429 = vmatprep.subr.mxu0 0.0
        %430 = vmatpush1.msra.mxu0 0.0
        %431 = vmatprep.subr.mxu0 0.0
        %432 = vmatpush1.msra.mxu0 0.0
        %433 = vmatprep.subr.mxu0 0.0
        %434 = vmatpush1.msra.mxu0 0.0
        %435 = vmatprep.subr.mxu0 0.0
        %436 = vmatpush1.msra.mxu0 0.0
        %437 = vmatprep.subr.mxu0 0.0
        %438 = vmatpush1.msra.mxu0 0.0
        %439 = vmatprep.subr.mxu0 0.0
        %440 = vmatpush1.msra.mxu0 0.0
        %441 = vmatprep.subr.mxu0 0.0
        %442 = vmatpush1.msra.mxu0 0.0
        %443 = vmatprep.subr.mxu0 0.0
        %444 = vmatpush1.msra.mxu0 0.0
        %445 = vmatprep.subr.mxu0 0.0
        %446 = vmatpush1.msra.mxu0 0.0
        %447 = vmatprep.subr.mxu0 0.0
        %448 = vmatpush1.msra.mxu0 0.0
        %449 = vmatprep.subr.mxu0 0.0
        %450 = vmatpush1.msra.mxu0 0.0
        %451 = vmatprep.subr.mxu0 0.0
        %452 = vmatpush1.msra.mxu0 0.0
        %453 = vmatprep.subr.mxu0 0.0
        %454 = vmatpush1.msra.mxu0 0.0
        %455 = vmatprep.subr.mxu0 0.0
        %456 = vmatpush1.msra.mxu0 0.0
        %457 = vmatprep.subr.mxu0 0.0
        %458 = vmatpush1.msra.mxu0 0.0
        %459 = vmatprep.subr.mxu0 0.0
        %460 = vmatpush1.msra.mxu0 0.0
        %461 = vmatprep.subr.mxu0 0.0
        %462 = vmatpush1.msra.mxu0 0.0
        %463 = vmatprep.subr.mxu0 0.0
        %464 = vmatpush1.msra.mxu0 0.0
        %465 = vmatprep.subr.mxu0 0.0
        %466 = vmatpush1.msra.mxu0 0.0
        %467 = vmatprep.subr.mxu0 0.0
        %468 = vmatpush1.msra.mxu0 0.0
        %469 = vmatprep.subr.mxu0 0.0
        %470 = vmatpush1.msra.mxu0 0.0
        %471 = vmatprep.subr.mxu0 0.0
        %472 = vmatpush1.msra.mxu0 0.0
        %473 = vmatprep.subr.mxu0 0.0
        %474 = vmatpush1.msra.mxu0 0.0
        %475 = vmatprep.subr.mxu0 0.0
        %476 = vmatpush1.msra.mxu0 0.0
        %477 = vmatprep.subr.mxu0 0.0
        %478 = vmatpush1.msra.mxu0 0.0
        %479 = vmatprep.subr.mxu0 0.0
        %480 = vmatpush1.msra.mxu0 0.0
        %481 = vmatprep.subr.mxu0 0.0
        %482 = vmatpush1.msra.mxu0 0.0
        %483 = vmatprep.mubr.f32.mxu0 0.0
        %484 = vmatmul.mubr.f32.gmra.mrb[0].mxu0 %v214
        %v485 = vpop.f32.mrb[0].mxu0
        %v486 = vadd.f32 0.0, %v485
        %v487 = vpop.f32.mrb[0].mxu0
        %488 = vmatprep.mubr.f32.mxu0 0.0
        %489 = vmatmul.mubr.f32.gmra.mrb[0].mxu0 %v217
        %v490 = vpop.f32.mrb[0].mxu0
        %v491 = vadd.f32 0.0, %v490
        %v492 = vpop.f32.mrb[0].mxu0
        %493 = vdwg.mxu0
        %s494 = scalar_lea.vmem %s172, 32 [#allocation7]
        %495 = vst.msk [vmem:[%s494] sm:$0xff] %vm298, %v486
        %496 = vst.msk [vmem:[%s494 + $0x8] sm:$0xff] %vm298, %v491
        %s497 = sadd.s32 %s195, 3
        %s498 = sshra.s32 %s497, 7
        %s499 = sand.u32 %s497, 127
        %s500 = sadd.s32 %s498, %s28
        %s501 = smul.u32 %s500, 128
        %s502 = sshra.s32 %s497, 7
        %s503 = sand.u32 %s497, 127
        %s504 = sadd.s32 %s501, %s503
        %s505 = sld [smem:[#allocation3 + %s504]]
        %p506 = scmp.gt.s32.totalorder %s505, 0
        %s507 = scalar_select %p506, %s505, 0
        %p508 = scmp.lt.s32.totalorder %s507, 8
        %s509 = scalar_select %p508, %s507, 8
        %s510 = smul.u32 %s509, 16
        %s511 = scalar_lea.vmem [#allocation4], %s510
        %v512 = vld [vmem:[%s511] sm:$0xff]
        %v513 = vld [vmem:[%s511 + $0x8] sm:$0x1]
        %v515 = vsel %vm219, %v513, 0
        %517 = vmatprep.subr.mxu0 0.0
        %518 = vmatpush1.msra.mxu0 %v512
        %519 = vmatprep.subr.mxu0 0.0
        %520 = vmatpush1.msra.mxu0 %v515
        %521 = vmatprep.subr.mxu0 0.0
        %522 = vmatpush1.msra.mxu0 0.0
        %523 = vmatprep.subr.mxu0 0.0
        %524 = vmatpush1.msra.mxu0 0.0
        %525 = vmatprep.subr.mxu0 0.0
        %526 = vmatpush1.msra.mxu0 0.0
        %527 = vmatprep.subr.mxu0 0.0
        %528 = vmatpush1.msra.mxu0 0.0
        %529 = vmatprep.subr.mxu0 0.0
        %530 = vmatpush1.msra.mxu0 0.0
        %531 = vmatprep.subr.mxu0 0.0
        %532 = vmatpush1.msra.mxu0 0.0
        %533 = vmatprep.subr.mxu0 0.0
        %534 = vmatpush1.msra.mxu0 0.0
        %535 = vmatprep.subr.mxu0 0.0
        %536 = vmatpush1.msra.mxu0 0.0
        %537 = vmatprep.subr.mxu0 0.0
        %538 = vmatpush1.msra.mxu0 0.0
        %539 = vmatprep.subr.mxu0 0.0
        %540 = vmatpush1.msra.mxu0 0.0
        %541 = vmatprep.subr.mxu0 0.0
        %542 = vmatpush1.msra.mxu0 0.0
        %543 = vmatprep.subr.mxu0 0.0
        %544 = vmatpush1.msra.mxu0 0.0
        %545 = vmatprep.subr.mxu0 0.0
        %546 = vmatpush1.msra.mxu0 0.0
        %547 = vmatprep.subr.mxu0 0.0
        %548 = vmatpush1.msra.mxu0 0.0
        %549 = vmatprep.subr.mxu0 0.0
        %550 = vmatpush1.msra.mxu0 0.0
        %551 = vmatprep.subr.mxu0 0.0
        %552 = vmatpush1.msra.mxu0 0.0
        %553 = vmatprep.subr.mxu0 0.0
        %554 = vmatpush1.msra.mxu0 0.0
        %555 = vmatprep.subr.mxu0 0.0
        %556 = vmatpush1.msra.mxu0 0.0
        %557 = vmatprep.subr.mxu0 0.0
        %558 = vmatpush1.msra.mxu0 0.0
        %559 = vmatprep.subr.mxu0 0.0
        %560 = vmatpush1.msra.mxu0 0.0
        %561 = vmatprep.subr.mxu0 0.0
        %562 = vmatpush1.msra.mxu0 0.0
        %563 = vmatprep.subr.mxu0 0.0
        %564 = vmatpush1.msra.mxu0 0.0
        %565 = vmatprep.subr.mxu0 0.0
        %566 = vmatpush1.msra.mxu0 0.0
        %567 = vmatprep.subr.mxu0 0.0
        %568 = vmatpush1.msra.mxu0 0.0
        %569 = vmatprep.subr.mxu0 0.0
        %570 = vmatpush1.msra.mxu0 0.0
        %571 = vmatprep.subr.mxu0 0.0
        %572 = vmatpush1.msra.mxu0 0.0
        %573 = vmatprep.subr.mxu0 0.0
        %574 = vmatpush1.msra.mxu0 0.0
        %575 = vmatprep.subr.mxu0 0.0
        %576 = vmatpush1.msra.mxu0 0.0
        %577 = vmatprep.subr.mxu0 0.0
        %578 = vmatpush1.msra.mxu0 0.0
        %579 = vmatprep.subr.mxu0 0.0
        %580 = vmatpush1.msra.mxu0 0.0
        %581 = vmatprep.mubr.f32.mxu0 0.0
        %582 = vmatmul.mubr.f32.gmra.mrb[0].mxu0 %v214
        %v583 = vpop.f32.mrb[0].mxu0
        %v584 = vadd.f32 0.0, %v583
        %v585 = vpop.f32.mrb[0].mxu0
        %586 = vmatprep.mubr.f32.mxu0 0.0
        %587 = vmatmul.mubr.f32.gmra.mrb[0].mxu0 %v217
        %v588 = vpop.f32.mrb[0].mxu0
        %v589 = vadd.f32 0.0, %v588
        %v590 = vpop.f32.mrb[0].mxu0
        %591 = vdwg.mxu0
        %s592 = scalar_lea.vmem %s172, 48 [#allocation7]
        %593 = vst.msk [vmem:[%s592] sm:$0xff] %vm298, %v584
        %594 = vst.msk [vmem:[%s592 + $0x8] sm:$0xff] %vm298, %v589
        %s595 = sadd.s32 %s195, 4
        %s596 = sshra.s32 %s595, 7
        %s597 = sand.u32 %s595, 127
        %s598 = sadd.s32 %s596, %s28
        %s599 = smul.u32 %s598, 128
        %s600 = sshra.s32 %s595, 7
        %s601 = sand.u32 %s595, 127
        %s602 = sadd.s32 %s599, %s601
        %s603 = sld [smem:[#allocation3 + %s602]]
        %p604 = scmp.gt.s32.totalorder %s603, 0
        %s605 = scalar_select %p604, %s603, 0
        %p606 = scmp.lt.s32.totalorder %s605, 8
        %s607 = scalar_select %p606, %s605, 8
        %s608 = smul.u32 %s607, 16
        %s609 = scalar_lea.vmem [#allocation4], %s608
        %v610 = vld [vmem:[%s609] sm:$0xff]
        %v611 = vld [vmem:[%s609 + $0x8] sm:$0x1]
        %v613 = vsel %vm219, %v611, 0
        %615 = vmatprep.subr.mxu0 0.0
        %616 = vmatpush1.msra.mxu0 %v610
        %617 = vmatprep.subr.mxu0 0.0
        %618 = vmatpush1.msra.mxu0 %v613
        %619 = vmatprep.subr.mxu0 0.0
        %620 = vmatpush1.msra.mxu0 0.0
        %621 = vmatprep.subr.mxu0 0.0
        %622 = vmatpush1.msra.mxu0 0.0
        %623 = vmatprep.subr.mxu0 0.0
        %624 = vmatpush1.msra.mxu0 0.0
        %625 = vmatprep.subr.mxu0 0.0
        %626 = vmatpush1.msra.mxu0 0.0
        %627 = vmatprep.subr.mxu0 0.0
        %628 = vmatpush1.msra.mxu0 0.0
        %629 = vmatprep.subr.mxu0 0.0
        %630 = vmatpush1.msra.mxu0 0.0
        %631 = vmatprep.subr.mxu0 0.0
        %632 = vmatpush1.msra.mxu0 0.0
        %633 = vmatprep.subr.mxu0 0.0
        %634 = vmatpush1.msra.mxu0 0.0
        %635 = vmatprep.subr.mxu0 0.0
        %636 = vmatpush1.msra.mxu0 0.0
        %637 = vmatprep.subr.mxu0 0.0
        %638 = vmatpush1.msra.mxu0 0.0
        %639 = vmatprep.subr.mxu0 0.0
        %640 = vmatpush1.msra.mxu0 0.0
        %641 = vmatprep.subr.mxu0 0.0
        %642 = vmatpush1.msra.mxu0 0.0
        %643 = vmatprep.subr.mxu0 0.0
        %644 = vmatpush1.msra.mxu0 0.0
        %645 = vmatprep.subr.mxu0 0.0
        %646 = vmatpush1.msra.mxu0 0.0
        %647 = vmatprep.subr.mxu0 0.0
        %648 = vmatpush1.msra.mxu0 0.0
        %649 = vmatprep.subr.mxu0 0.0
        %650 = vmatpush1.msra.mxu0 0.0
        %651 = vmatprep.subr.mxu0 0.0
        %652 = vmatpush1.msra.mxu0 0.0
        %653 = vmatprep.subr.mxu0 0.0
        %654 = vmatpush1.msra.mxu0 0.0
        %655 = vmatprep.subr.mxu0 0.0
        %656 = vmatpush1.msra.mxu0 0.0
        %657 = vmatprep.subr.mxu0 0.0
        %658 = vmatpush1.msra.mxu0 0.0
        %659 = vmatprep.subr.mxu0 0.0
        %660 = vmatpush1.msra.mxu0 0.0
        %661 = vmatprep.subr.mxu0 0.0
        %662 = vmatpush1.msra.mxu0 0.0
        %663 = vmatprep.subr.mxu0 0.0
        %664 = vmatpush1.msra.mxu0 0.0
        %665 = vmatprep.subr.mxu0 0.0
        %666 = vmatpush1.msra.mxu0 0.0
        %667 = vmatprep.subr.mxu0 0.0
        %668 = vmatpush1.msra.mxu0 0.0
        %669 = vmatprep.subr.mxu0 0.0
        %670 = vmatpush1.msra.mxu0 0.0
        %671 = vmatprep.subr.mxu0 0.0
        %672 = vmatpush1.msra.mxu0 0.0
        %673 = vmatprep.subr.mxu0 0.0
        %674 = vmatpush1.msra.mxu0 0.0
        %675 = vmatprep.subr.mxu0 0.0
        %676 = vmatpush1.msra.mxu0 0.0
        %677 = vmatprep.subr.mxu0 0.0
        %678 = vmatpush1.msra.mxu0 0.0
        %679 = vmatprep.mubr.f32.mxu0 0.0
        %680 = vmatmul.mubr.f32.gmra.mrb[0].mxu0 %v214
        %v681 = vpop.f32.mrb[0].mxu0
        %v682 = vadd.f32 0.0, %v681
        %v683 = vpop.f32.mrb[0].mxu0
        %684 = vmatprep.mubr.f32.mxu0 0.0
        %685 = vmatmul.mubr.f32.gmra.mrb[0].mxu0 %v217
        %v686 = vpop.f32.mrb[0].mxu0
        %v687 = vadd.f32 0.0, %v686
        %v688 = vpop.f32.mrb[0].mxu0
        %689 = vdwg.mxu0
        %s690 = scalar_lea.vmem %s172, 64 [#allocation7]
        %691 = vst.msk [vmem:[%s690] sm:$0xff] %vm298, %v682
        %692 = vst.msk [vmem:[%s690 + $0x8] sm:$0xff] %vm298, %v687
        %s693 = sadd.s32 %s195, 5
        %s694 = sshra.s32 %s693, 7
        %s695 = sand.u32 %s693, 127
        %s696 = sadd.s32 %s694, %s28
        %s697 = smul.u32 %s696, 128
        %s698 = sshra.s32 %s693, 7
        %s699 = sand.u32 %s693, 127
        %s700 = sadd.s32 %s697, %s699
        %s701 = sld [smem:[#allocation3 + %s700]]
        %p702 = scmp.gt.s32.totalorder %s701, 0
        %s703 = scalar_select %p702, %s701, 0
        %p704 = scmp.lt.s32.totalorder %s703, 8
        %s705 = scalar_select %p704, %s703, 8
        %s706 = smul.u32 %s705, 16
        %s707 = scalar_lea.vmem [#allocation4], %s706
        %v708 = vld [vmem:[%s707] sm:$0xff]
        %v709 = vld [vmem:[%s707 + $0x8] sm:$0x1]
        %v711 = vsel %vm219, %v709, 0
        %713 = vmatprep.subr.mxu0 0.0
        %714 = vmatpush1.msra.mxu0 %v708
        %715 = vmatprep.subr.mxu0 0.0
        %716 = vmatpush1.msra.mxu0 %v711
        %717 = vmatprep.subr.mxu0 0.0
        %718 = vmatpush1.msra.mxu0 0.0
        %719 = vmatprep.subr.mxu0 0.0
        %720 = vmatpush1.msra.mxu0 0.0
        %721 = vmatprep.subr.mxu0 0.0
        %722 = vmatpush1.msra.mxu0 0.0
        %723 = vmatprep.subr.mxu0 0.0
        %724 = vmatpush1.msra.mxu0 0.0
        %725 = vmatprep.subr.mxu0 0.0
        %726 = vmatpush1.msra.mxu0 0.0
        %727 = vmatprep.subr.mxu0 0.0
        %728 = vmatpush1.msra.mxu0 0.0
        %729 = vmatprep.subr.mxu0 0.0
        %730 = vmatpush1.msra.mxu0 0.0
        %731 = vmatprep.subr.mxu0 0.0
        %732 = vmatpush1.msra.mxu0 0.0
        %733 = vmatprep.subr.mxu0 0.0
        %734 = vmatpush1.msra.mxu0 0.0
        %735 = vmatprep.subr.mxu0 0.0
        %736 = vmatpush1.msra.mxu0 0.0
        %737 = vmatprep.subr.mxu0 0.0
        %738 = vmatpush1.msra.mxu0 0.0
        %739 = vmatprep.subr.mxu0 0.0
        %740 = vmatpush1.msra.mxu0 0.0
        %741 = vmatprep.subr.mxu0 0.0
        %742 = vmatpush1.msra.mxu0 0.0
        %743 = vmatprep.subr.mxu0 0.0
        %744 = vmatpush1.msra.mxu0 0.0
        %745 = vmatprep.subr.mxu0 0.0
        %746 = vmatpush1.msra.mxu0 0.0
        %747 = vmatprep.subr.mxu0 0.0
        %748 = vmatpush1.msra.mxu0 0.0
        %749 = vmatprep.subr.mxu0 0.0
        %750 = vmatpush1.msra.mxu0 0.0
        %751 = vmatprep.subr.mxu0 0.0
        %752 = vmatpush1.msra.mxu0 0.0
        %753 = vmatprep.subr.mxu0 0.0
        %754 = vmatpush1.msra.mxu0 0.0
        %755 = vmatprep.subr.mxu0 0.0
        %756 = vmatpush1.msra.mxu0 0.0
        %757 = vmatprep.subr.mxu0 0.0
        %758 = vmatpush1.msra.mxu0 0.0
        %759 = vmatprep.subr.mxu0 0.0
        %760 = vmatpush1.msra.mxu0 0.0
        %761 = vmatprep.subr.mxu0 0.0
        %762 = vmatpush1.msra.mxu0 0.0
        %763 = vmatprep.subr.mxu0 0.0
        %764 = vmatpush1.msra.mxu0 0.0
        %765 = vmatprep.subr.mxu0 0.0
        %766 = vmatpush1.msra.mxu0 0.0
        %767 = vmatprep.subr.mxu0 0.0
        %768 = vmatpush1.msra.mxu0 0.0
        %769 = vmatprep.subr.mxu0 0.0
        %770 = vmatpush1.msra.mxu0 0.0
        %771 = vmatprep.subr.mxu0 0.0
        %772 = vmatpush1.msra.mxu0 0.0
        %773 = vmatprep.subr.mxu0 0.0
        %774 = vmatpush1.msra.mxu0 0.0
        %775 = vmatprep.subr.mxu0 0.0
        %776 = vmatpush1.msra.mxu0 0.0
        %777 = vmatprep.mubr.f32.mxu0 0.0
        %778 = vmatmul.mubr.f32.gmra.mrb[0].mxu0 %v214
        %v779 = vpop.f32.mrb[0].mxu0
        %v780 = vadd.f32 0.0, %v779
        %v781 = vpop.f32.mrb[0].mxu0
        %782 = vmatprep.mubr.f32.mxu0 0.0
        %783 = vmatmul.mubr.f32.gmra.mrb[0].mxu0 %v217
        %v784 = vpop.f32.mrb[0].mxu0
        %v785 = vadd.f32 0.0, %v784
        %v786 = vpop.f32.mrb[0].mxu0
        %787 = vdwg.mxu0
        %s788 = scalar_lea.vmem %s172, 80 [#allocation7]
        %789 = vst.msk [vmem:[%s788] sm:$0xff] %vm298, %v780
        %790 = vst.msk [vmem:[%s788 + $0x8] sm:$0xff] %vm298, %v785
        %s791 = sadd.s32 %s195, 6
        %s792 = sshra.s32 %s791, 7
        %s793 = sand.u32 %s791, 127
        %s794 = sadd.s32 %s792, %s28
        %s795 = smul.u32 %s794, 128
        %s796 = sshra.s32 %s791, 7
        %s797 = sand.u32 %s791, 127
        %s798 = sadd.s32 %s795, %s797
        %s799 = sld [smem:[#allocation3 + %s798]]
        %p800 = scmp.gt.s32.totalorder %s799, 0
        %s801 = scalar_select %p800, %s799, 0
        %p802 = scmp.lt.s32.totalorder %s801, 8
        %s803 = scalar_select %p802, %s801, 8
        %s804 = smul.u32 %s803, 16
        %s805 = scalar_lea.vmem [#allocation4], %s804
        %v806 = vld [vmem:[%s805] sm:$0xff]
        %v807 = vld [vmem:[%s805 + $0x8] sm:$0x1]
        %v809 = vsel %vm219, %v807, 0
        %811 = vmatprep.subr.mxu0 0.0
        %812 = vmatpush1.msra.mxu0 %v806
        %813 = vmatprep.subr.mxu0 0.0
        %814 = vmatpush1.msra.mxu0 %v809
        %815 = vmatprep.subr.mxu0 0.0
        %816 = vmatpush1.msra.mxu0 0.0
        %817 = vmatprep.subr.mxu0 0.0
        %818 = vmatpush1.msra.mxu0 0.0
        %819 = vmatprep.subr.mxu0 0.0
        %820 = vmatpush1.msra.mxu0 0.0
        %821 = vmatprep.subr.mxu0 0.0
        %822 = vmatpush1.msra.mxu0 0.0
        %823 = vmatprep.subr.mxu0 0.0
        %824 = vmatpush1.msra.mxu0 0.0
        %825 = vmatprep.subr.mxu0 0.0
        %826 = vmatpush1.msra.mxu0 0.0
        %827 = vmatprep.subr.mxu0 0.0
        %828 = vmatpush1.msra.mxu0 0.0
        %829 = vmatprep.subr.mxu0 0.0
        %830 = vmatpush1.msra.mxu0 0.0
        %831 = vmatprep.subr.mxu0 0.0
        %832 = vmatpush1.msra.mxu0 0.0
        %833 = vmatprep.subr.mxu0 0.0
        %834 = vmatpush1.msra.mxu0 0.0
        %835 = vmatprep.subr.mxu0 0.0
        %836 = vmatpush1.msra.mxu0 0.0
        %837 = vmatprep.subr.mxu0 0.0
        %838 = vmatpush1.msra.mxu0 0.0
        %839 = vmatprep.subr.mxu0 0.0
        %840 = vmatpush1.msra.mxu0 0.0
        %841 = vmatprep.subr.mxu0 0.0
        %842 = vmatpush1.msra.mxu0 0.0
        %843 = vmatprep.subr.mxu0 0.0
        %844 = vmatpush1.msra.mxu0 0.0
        %845 = vmatprep.subr.mxu0 0.0
        %846 = vmatpush1.msra.mxu0 0.0
        %847 = vmatprep.subr.mxu0 0.0
        %848 = vmatpush1.msra.mxu0 0.0
        %849 = vmatprep.subr.mxu0 0.0
        %850 = vmatpush1.msra.mxu0 0.0
        %851 = vmatprep.subr.mxu0 0.0
        %852 = vmatpush1.msra.mxu0 0.0
        %853 = vmatprep.subr.mxu0 0.0
        %854 = vmatpush1.msra.mxu0 0.0
        %855 = vmatprep.subr.mxu0 0.0
        %856 = vmatpush1.msra.mxu0 0.0
        %857 = vmatprep.subr.mxu0 0.0
        %858 = vmatpush1.msra.mxu0 0.0
        %859 = vmatprep.subr.mxu0 0.0
        %860 = vmatpush1.msra.mxu0 0.0
        %861 = vmatprep.subr.mxu0 0.0
        %862 = vmatpush1.msra.mxu0 0.0
        %863 = vmatprep.subr.mxu0 0.0
        %864 = vmatpush1.msra.mxu0 0.0
        %865 = vmatprep.subr.mxu0 0.0
        %866 = vmatpush1.msra.mxu0 0.0
        %867 = vmatprep.subr.mxu0 0.0
        %868 = vmatpush1.msra.mxu0 0.0
        %869 = vmatprep.subr.mxu0 0.0
        %870 = vmatpush1.msra.mxu0 0.0
        %871 = vmatprep.subr.mxu0 0.0
        %872 = vmatpush1.msra.mxu0 0.0
        %873 = vmatprep.subr.mxu0 0.0
        %874 = vmatpush1.msra.mxu0 0.0
        %875 = vmatprep.mubr.f32.mxu0 0.0
        %876 = vmatmul.mubr.f32.gmra.mrb[0].mxu0 %v214
        %v877 = vpop.f32.mrb[0].mxu0
        %v878 = vadd.f32 0.0, %v877
        %v879 = vpop.f32.mrb[0].mxu0
        %880 = vmatprep.mubr.f32.mxu0 0.0
        %881 = vmatmul.mubr.f32.gmra.mrb[0].mxu0 %v217
        %v882 = vpop.f32.mrb[0].mxu0
        %v883 = vadd.f32 0.0, %v882
        %v884 = vpop.f32.mrb[0].mxu0
        %885 = vdwg.mxu0
        %s886 = scalar_lea.vmem %s172, 96 [#allocation7]
        %887 = vst.msk [vmem:[%s886] sm:$0xff] %vm298, %v878
        %888 = vst.msk [vmem:[%s886 + $0x8] sm:$0xff] %vm298, %v883
        %s889 = sadd.s32 %s195, 7
        %s890 = sshra.s32 %s889, 7
        %s891 = sand.u32 %s889, 127
        %s892 = sadd.s32 %s890, %s28
        %s893 = smul.u32 %s892, 128
        %s894 = sshra.s32 %s889, 7
        %s895 = sand.u32 %s889, 127
        %s896 = sadd.s32 %s893, %s895
        %s897 = sld [smem:[#allocation3 + %s896]]
        %p898 = scmp.gt.s32.totalorder %s897, 0
        %s899 = scalar_select %p898, %s897, 0
        %p900 = scmp.lt.s32.totalorder %s899, 8
        %s901 = scalar_select %p900, %s899, 8
        %s902 = smul.u32 %s901, 16
        %s903 = scalar_lea.vmem [#allocation4], %s902
        %v904 = vld [vmem:[%s903] sm:$0xff]
        %v905 = vld [vmem:[%s903 + $0x8] sm:$0x1]
        %v907 = vsel %vm219, %v905, 0
        %909 = vmatprep.subr.mxu0 0.0
        %910 = vmatpush1.msra.mxu0 %v904
        %911 = vmatprep.subr.mxu0 0.0
        %912 = vmatpush1.msra.mxu0 %v907
        %913 = vmatprep.subr.mxu0 0.0
        %914 = vmatpush1.msra.mxu0 0.0
        %915 = vmatprep.subr.mxu0 0.0
        %916 = vmatpush1.msra.mxu0 0.0
        %917 = vmatprep.subr.mxu0 0.0
        %918 = vmatpush1.msra.mxu0 0.0
        %919 = vmatprep.subr.mxu0 0.0
        %920 = vmatpush1.msra.mxu0 0.0
        %921 = vmatprep.subr.mxu0 0.0
        %922 = vmatpush1.msra.mxu0 0.0
        %923 = vmatprep.subr.mxu0 0.0
        %924 = vmatpush1.msra.mxu0 0.0
        %925 = vmatprep.subr.mxu0 0.0
        %926 = vmatpush1.msra.mxu0 0.0
        %927 = vmatprep.subr.mxu0 0.0
        %928 = vmatpush1.msra.mxu0 0.0
        %929 = vmatprep.subr.mxu0 0.0
        %930 = vmatpush1.msra.mxu0 0.0
        %931 = vmatprep.subr.mxu0 0.0
        %932 = vmatpush1.msra.mxu0 0.0
        %933 = vmatprep.subr.mxu0 0.0
        %934 = vmatpush1.msra.mxu0 0.0
        %935 = vmatprep.subr.mxu0 0.0
        %936 = vmatpush1.msra.mxu0 0.0
        %937 = vmatprep.subr.mxu0 0.0
        %938 = vmatpush1.msra.mxu0 0.0
        %939 = vmatprep.subr.mxu0 0.0
        %940 = vmatpush1.msra.mxu0 0.0
        %941 = vmatprep.subr.mxu0 0.0
        %942 = vmatpush1.msra.mxu0 0.0
        %943 = vmatprep.subr.mxu0 0.0
        %944 = vmatpush1.msra.mxu0 0.0
        %945 = vmatprep.subr.mxu0 0.0
        %946 = vmatpush1.msra.mxu0 0.0
        %947 = vmatprep.subr.mxu0 0.0
        %948 = vmatpush1.msra.mxu0 0.0
        %949 = vmatprep.subr.mxu0 0.0
        %950 = vmatpush1.msra.mxu0 0.0
        %951 = vmatprep.subr.mxu0 0.0
        %952 = vmatpush1.msra.mxu0 0.0
        %953 = vmatprep.subr.mxu0 0.0
        %954 = vmatpush1.msra.mxu0 0.0
        %955 = vmatprep.subr.mxu0 0.0
        %956 = vmatpush1.msra.mxu0 0.0
        %957 = vmatprep.subr.mxu0 0.0
        %958 = vmatpush1.msra.mxu0 0.0
        %959 = vmatprep.subr.mxu0 0.0
        %960 = vmatpush1.msra.mxu0 0.0
        %961 = vmatprep.subr.mxu0 0.0
        %962 = vmatpush1.msra.mxu0 0.0
        %963 = vmatprep.subr.mxu0 0.0
        %964 = vmatpush1.msra.mxu0 0.0
        %965 = vmatprep.subr.mxu0 0.0
        %966 = vmatpush1.msra.mxu0 0.0
        %967 = vmatprep.subr.mxu0 0.0
        %968 = vmatpush1.msra.mxu0 0.0
        %969 = vmatprep.subr.mxu0 0.0
        %970 = vmatpush1.msra.mxu0 0.0
        %971 = vmatprep.subr.mxu0 0.0
        %972 = vmatpush1.msra.mxu0 0.0
        %973 = vmatprep.mubr.f32.mxu0 0.0
        %974 = vmatmul.mubr.f32.gmra.mrb[0].mxu0 %v214
        %v975 = vpop.f32.mrb[0].mxu0
        %v976 = vadd.f32 0.0, %v975
        %v977 = vpop.f32.mrb[0].mxu0
        %978 = vmatprep.mubr.f32.mxu0 0.0
        %979 = vmatmul.mubr.f32.gmra.mrb[0].mxu0 %v217
        %v980 = vpop.f32.mrb[0].mxu0
        %v981 = vadd.f32 0.0, %v980
        %v982 = vpop.f32.mrb[0].mxu0
        %983 = vdwg.mxu0
        %s984 = scalar_lea.vmem %s172, 112 [#allocation7]
        %985 = vst.msk [vmem:[%s984] sm:$0xff] %vm298, %v976
        %986 = vst.msk [vmem:[%s984 + $0x8] sm:$0xff] %vm298, %v981
        %s987 = sand.u32 %s93, 1
        %s988 = scalar_lea.sflag [#allocation6], %s987
        %s989 = sand.u32 %s93, 1
        %s990 = smul.addr %s989, 128
        %s991 = scalar_lea.vmem [#allocation7], %s990
        // Predicated region
        $region33: #{tpu_custom_call.1} parent=27 // pred_check
          %p992 = pneg %p103
        $region34: #{tpu_custom_call.1} parent=27 // pred_check_branch
          %994 = sbr.rel (%p992) target = $region36
        $region35: #{tpu_custom_call.1} parent=27 // pred_region
          %s995 = smul.u32 8, %s29
          %s997 = ssub.s32 2048, 2048
          %998 = vsyncadd %s988, %s997
          %s999 = smul.addr %s995, 2
          %s1000 = smul.addr %s28, 32
          %s1001 = sadd.s32 %s999, %s1000
          %s1002 = smul.addr %s1001, 128
          %s1003 = scalar_lea.hbm %s3, %s1002
          %s1004 = sshll.u32 %s991, 4
          %s1005 = int_to_ptr.vmem [resolvable:$true] %s1004
          %1010 = dma.vmem_to_hbm [thread:$0]  %s1005, 2048, %s1003, %s988, 128, 128, 8
        $region36: #{tpu_custom_call.1} parent=27 // pred_fallthru
          _
      $region28: #{tpu_custom_call.1} parent=5 // pred_fallthru
        _
      %p1011 = scmp.le.s32.totalorder 2, %s19
      // Predicated region
      $region37: #{tpu_custom_call.1} parent=5 // pred_check
        %p1012 = pneg %p1011
      $region38: #{tpu_custom_call.1} parent=5 // pred_check_branch
        %1014 = sbr.rel (%p1012) target = $region40
      $region39: #{tpu_custom_call.1} parent=5 // pred_region
        %s1015 = ssub.s32 %s19, 2
        // Predicated region
        $region41: #{tpu_custom_call.1} parent=39 // pred_check
          %p1016 = pneg %p109
        $region42: #{tpu_custom_call.1} parent=39 // pred_check_branch
          %1018 = sbr.rel (%p1016) target = $region44
        $region43: #{tpu_custom_call.1} parent=39 // pred_region
          %s1019 = sand.u32 %s94, 1
          %s1020 = scalar_lea.sflag [#allocation6], %s1019
          %s1021 = sand.u32 %s94, 1
          %s1022 = smul.addr %s1021, 128
          %s1023 = scalar_lea.vmem [#allocation7], %s1022
          %1024 = dma.done %s1020, 2048
        $region44: #{tpu_custom_call.1} parent=39 // pred_fallthru
          _
      $region40: #{tpu_custom_call.1} parent=5 // pred_fallthru
        _
    $region6: #{tpu_custom_call.1} parent=1 // loop_footer
      %s23 = sadd.s32 1, %s19
    $region7: #{tpu_custom_call.1} parent=1 // loop_footer_branch
      %18 = sbr.rel target = $region3
    $region8: #{tpu_custom_call.1} parent=1 // loop_exit
      _
    %1025 = vsyncpa [#allocation5], 1
    %s1026 = scalar_lea.sflag [#allocation5], 1
    %1027 = vsyncpa %s1026, 1
    %1028 = vsyncpa [#allocation6], 1
    %s1029 = scalar_lea.sflag [#allocation6], 1
    %1030 = vsyncpa %s1029, 1

</llo_original>
